<compile_context>
chip_gen: v5e
topology: v5e:2x2
jax: 0.10.0
libtpu: 0.0.40
codegen_flags: <defaults>
</compile_context>

<pallas_src>
import functools

import jax
import jax.numpy as jnp
from jax.experimental import pallas as pl
from jax.experimental.pallas import tpu as pltpu


_SQRT_HALF = 0.7071067811865476
# Abramowitz & Stegun 7.1.26 erf coefficients (max abs err ~1.5e-7).
_A1 = 0.254829592
_A2 = -0.284496736
_A3 = 1.421413741
_A4 = -1.453152027
_A5 = 1.061405429
_P = 0.3275911


def _gelu_exact_f32(x):
    """PyTorch nn.GELU() default (erf), select-free, EUP reciprocal.

    GELU(x) = 0.5*x*(1 + erf(x/sqrt(2))).  With z = |x|/sqrt(2) >= 0 and
    y = erf(z) >= 0 we have erf(x/sqrt(2)) = sign(x)*y, so
        GELU(x) = 0.5*x + 0.5*|x|*y
    which removes the final sign select; the divide in the A&S rational
    approximation goes to the EUP slot via pl.reciprocal(approx=True).
    """
    ax = jnp.abs(x)
    z = ax * _SQRT_HALF
    t = pl.reciprocal(1.0 + _P * z, approx=True)
    poly = ((((_A5 * t + _A4) * t + _A3) * t + _A2) * t + _A1) * t
    y = 1.0 - poly * jnp.exp(-z * z)          # erf(z) for z >= 0
    return 0.5 * x + 0.5 * ax * y


def mlp_kernel(x_ref, w1_ref, b1_ref, w2_ref, b2_ref, o_ref, *,
               hidden_chunk, compute_dtype):
    # x_ref : (tile_m, Din_p)   original dtype (cast to compute dtype here)
    # w1_ref: (Din_p, H_p)      compute dtype, grid-invariant (single buffer)
    # b1_ref: (1, H_p)          f32
    # w2_ref: (H_p, Dout_p)     compute dtype, grid-invariant (single buffer)
    # b2_ref: (1, Dout_p)       f32
    # o_ref : (tile_m, Dout_p)  original model dtype
    x = x_ref[...].astype(compute_dtype)
    tm = x_ref.shape[0]
    dout_p = o_ref.shape[1]
    hid_p = w1_ref.shape[1]
    num_chunks = hid_p // hidden_chunk

    acc = jnp.zeros((tm, dout_p), jnp.float32)
    # Chunk the hidden dim: keeps the live f32 hidden at (tm, chunk) instead
    # of (tm, H) and interleaves GELU (VPU/EUP) with matmul2 (MXU).
    for c in range(num_chunks):
        lo = c * hidden_chunk
        hi = lo + hidden_chunk
        h = jnp.dot(x, w1_ref[:, lo:hi],
                    preferred_element_type=jnp.float32) + b1_ref[:, lo:hi]
        h = _gelu_exact_f32(h)
        # TODO(synk): nn.Dropout(p=0.2) is identity in eval/inference mode; a
        # training-mode kernel would draw masks here with pltpu.prng_seed +
        # pltpu.stateful_bernoulli.
        acc = acc + jnp.dot(h.astype(compute_dtype), w2_ref[lo:hi, :],
                            preferred_element_type=jnp.float32)
    o_ref[...] = (acc + b2_ref[...]).astype(o_ref.dtype)


def _round_up(x, m):
    return (x + m - 1) // m * m


def _pad_axis(a, axis, target):
    pad = target - a.shape[axis]
    if pad == 0:
        return a
    widths = [(0, 0)] * a.ndim
    widths[axis] = (0, pad)
    return jnp.pad(a, widths)


def _pick_hidden_chunk(hid_p, target=512):
    # Largest multiple of 128 <= target that divides hid_p (hid_p % 128 == 0).
    c = min(target, hid_p)
    while hid_p % c:
        c -= 128
    return c


def _vmem_capacity_bytes():
    try:
        return int(pltpu.get_tpu_info().vmem_capacity_bytes)
    except Exception:
        return 64 * 1024 * 1024  # conservative: v7x per-TC physical VMEM


def _resident_spec(shape):
    """Grid-invariant operand: constant index_map, single-buffered in VMEM."""
    index_map = lambda i: (0,) * len(shape)
    try:
        return pl.BlockSpec(shape, index_map, pipeline_mode=pl.Buffered(1))
    except TypeError:  # older jax without pipeline_mode kwarg
        return pl.BlockSpec(shape, index_map)


@functools.partial(jax.jit, static_argnames=("tile_m", "compute_dtype"))
def mlp_forward(x, w1, b1, w2, b2, *, tile_m=None, compute_dtype=jnp.bfloat16):
    """MLP forward (eval mode).

    x : (..., in_features)
    w1: (hidden_features, in_features)   -- PyTorch nn.Linear layout
    b1: (hidden_features,)
    w2: (out_features, hidden_features)
    b2: (out_features,)
    returns (..., out_features) in x.dtype
    """
    orig_dtype = x.dtype
    din = x.shape[-1]
    hid, din_w = w1.shape
    dout, hid_w = w2.shape
    assert din_w == din and hid_w == hid

    lead = x.shape[:-1]
    m = 1
    for s in lead:
        m *= s

    # Lane-dense feature dims (multiples of 128); no-op for real ViT sizes.
    din_p = _round_up(din, 128)
    hid_p = _round_up(hid, 128)
    dout_p = _round_up(dout, 128)

    vmem_cap = _vmem_capacity_bytes()
    if tile_m is None:
        # 128 MiB VMEM (v5e/v6e) -> bigger row tiles; 64 MiB (v7x) -> half.
        tile_m = 1024 if vmem_cap >= 96 * 1024 * 1024 else 512

    # Row tile: multiple of 16 (bf16 sublane packing; also valid for f32).
    tm = max(16, min(tile_m, _round_up(m, 16)))
    tm = _round_up(tm, 16)
    m_p = _round_up(m, tm)
    # Guarantee >= 2 grid steps when there are enough rows so both v7x
    # TensorCores get work under dimension_semantics=("parallel",).
    if m_p // tm < 2 and m > 16:
        tm = _round_up(-(-m // 2), 16)
        m_p = _round_up(m, tm)

    # Fold leading dims into rows.  x streams in its original dtype and is
    # cast to the compute dtype inside the kernel (no extra XLA cast pass).
    x2 = _pad_axis(_pad_axis(x.reshape(m, din), 0, m_p), 1, din_p)
    w1_t = _pad_axis(_pad_axis(w1.T.astype(compute_dtype), 0, din_p), 1, hid_p)
    w2_t = _pad_axis(_pad_axis(w2.T.astype(compute_dtype), 0, hid_p), 1, dout_p)
    b1_p = _pad_axis(b1.astype(jnp.float32).reshape(1, hid), 1, hid_p)
    b2_p = _pad_axis(b2.astype(jnp.float32).reshape(1, dout), 1, dout_p)

    hidden_chunk = _pick_hidden_chunk(hid_p)
    kernel = functools.partial(mlp_kernel, hidden_chunk=hidden_chunk,
                               compute_dtype=compute_dtype)

    out = pl.pallas_call(
        kernel,
        out_shape=jax.ShapeDtypeStruct((m_p, dout_p), orig_dtype),
        grid_spec=pltpu.PrefetchScalarGridSpec(
            num_scalar_prefetch=0,
            grid=(m_p // tm,),
            in_specs=[
                pl.BlockSpec((tm, din_p), lambda i: (i, 0)),
                _resident_spec((din_p, hid_p)),
                _resident_spec((1, hid_p)),
                _resident_spec((hid_p, dout_p)),
                _resident_spec((1, dout_p)),
            ],
            out_specs=pl.BlockSpec((tm, dout_p), lambda i: (i, 0)),
        ),
        compiler_params=pltpu.CompilerParams(
            dimension_semantics=("parallel",),
            vmem_limit_bytes=int(vmem_cap * 3 // 4),
        ),
    )(x2, w1_t, b1_p, w2_t, b2_p)

    out = out[:m, :dout]
    return out.reshape(*lead, dout)


def reference_forward(x, w1, b1, w2, b2):
    """Pure-jnp reference mirroring the PyTorch forward (eval mode) exactly."""
    h = jnp.einsum("...i,hi->...h", x, w1) + b1
    h = jax.nn.gelu(h, approximate=False)          # nn.GELU() default (erf)
    return jnp.einsum("...h,oh->...o", h, w2) + b2


if __name__ == "__main__":
    # Small shapes consistent with the module: batch=2, seq=8,
    # in_features=32, hidden_features=64, out_features=32.
    B, S = 2, 8
    in_features, hidden_features, out_features = 32, 64, 32

    key = jax.random.PRNGKey(0)
    k_x, k_w1, k_b1, k_w2, k_b2 = jax.random.split(key, 5)

    x = jax.random.normal(k_x, (B, S, in_features), dtype=jnp.float32)
    bound1 = 1.0 / (in_features ** 0.5)
    w1 = jax.random.uniform(k_w1, (hidden_features, in_features),
                            jnp.float32, -bound1, bound1)
    b1 = jax.random.uniform(k_b1, (hidden_features,),
                            jnp.float32, -bound1, bound1)
    bound2 = 1.0 / (hidden_features ** 0.5)
    w2 = jax.random.uniform(k_w2, (out_features, hidden_features),
                            jnp.float32, -bound2, bound2)
    b2 = jax.random.uniform(k_b2, (out_features,),
                            jnp.float32, -bound2, bound2)

    ref = reference_forward(x, w1, b1, w2, b2)

    # f32-compute path: checks kernel plumbing / padding / chunking / GELU.
    out_f32 = jax.block_until_ready(
        mlp_forward(x, w1, b1, w2, b2, compute_dtype=jnp.float32))
    assert out_f32.shape == (B, S, out_features), out_f32.shape
    assert out_f32.dtype == x.dtype, out_f32.dtype
    assert jnp.allclose(out_f32, ref, atol=1e-2, rtol=1e-2), "f32 mismatch"

    # Default bf16 MXU path: looser tolerance from bf16 operand rounding.
    out_bf16 = jax.block_until_ready(mlp_forward(x, w1, b1, w2, b2))
    assert out_bf16.shape == (B, S, out_features), out_bf16.shape
    assert jnp.allclose(out_bf16, ref, atol=5e-2, rtol=5e-2), "bf16 mismatch"

    print("KERNEL_OK")
</pallas_src>

<mosaic_0001>
module attributes {stable_mosaic.version = 11 : i64} {
  func.func @mlp_kernel(%arg0: i32, %arg1: memref<16x128xf32, #tpu.memory_space<vmem>>, %arg2: memref<128x128xf32, #tpu.memory_space<vmem>>, %arg3: memref<1x128xf32, #tpu.memory_space<vmem>>, %arg4: memref<128x128xf32, #tpu.memory_space<vmem>>, %arg5: memref<1x128xf32, #tpu.memory_space<vmem>>, %arg6: memref<16x128xf32, #tpu.memory_space<vmem>>) attributes {dimension_semantics = [#tpu.dimension_semantics<parallel>], iteration_bounds = array<i64: 1>, scalar_prefetch = 0 : i64, scratch_operands = 0 : i64, tpu.core_type = #tpu.core_type<tc>, window_params = [{transform_indices = @transform_0, window_bounds = array<i64: 16, 128>}, {pipeline_mode = #tpu.pipeline_mode<synchronous>, transform_indices = @transform_1, window_bounds = array<i64: 128, 128>}, {pipeline_mode = #tpu.pipeline_mode<synchronous>, transform_indices = @transform_2, window_bounds = array<i64: 1, 128>}, {pipeline_mode = #tpu.pipeline_mode<synchronous>, transform_indices = @transform_3, window_bounds = array<i64: 128, 128>}, {pipeline_mode = #tpu.pipeline_mode<synchronous>, transform_indices = @transform_4, window_bounds = array<i64: 1, 128>}, {transform_indices = @transform_5, window_bounds = array<i64: 16, 128>}]} {
    %c0 = arith.constant 0 : index
    %c0_0 = arith.constant 0 : index
    %0 = vector.load %arg1[%c0, %c0_0] : memref<16x128xf32, #tpu.memory_space<vmem>>, vector<16x128xf32>
    %cst = arith.constant 0.000000e+00 : f32
    %1 = vector.broadcast %cst : f32 to vector<16x128xf32>
    %c0_1 = arith.constant 0 : index
    %c0_2 = arith.constant 0 : index
    %2 = vector.load %arg2[%c0_1, %c0_2] : memref<128x128xf32, #tpu.memory_space<vmem>>, vector<128x128xf32>
    %cst_3 = arith.constant dense<0.000000e+00> : vector<16x128xf32>
    %3 = tpu.matmul %0, %2, %cst_3 {dimension_numbers = #tpu.dot_dimension_numbers<[1], [0], [0], [1], [0, 0, 1, 1], [], []>} : vector<16x128xf32>, vector<128x128xf32>, vector<16x128xf32> -> vector<16x128xf32>
    %c0_4 = arith.constant 0 : index
    %c0_5 = arith.constant 0 : index
    %4 = vector.load %arg3[%c0_4, %c0_5] : memref<1x128xf32, #tpu.memory_space<vmem>>, vector<1x128xf32>
    %5 = vector.broadcast %4 : vector<1x128xf32> to vector<16x128xf32>
    %6 = arith.addf %3, %5 : vector<16x128xf32>
    %7 = math.absf %6 : vector<16x128xf32>
    %cst_6 = arith.constant 0.707106769 : f32
    %8 = vector.broadcast %cst_6 : f32 to vector<16x128xf32>
    %9 = arith.mulf %7, %8 : vector<16x128xf32>
    %cst_7 = arith.constant 0.327591091 : f32
    %10 = vector.broadcast %cst_7 : f32 to vector<16x128xf32>
    %11 = arith.mulf %10, %9 : vector<16x128xf32>
    %cst_8 = arith.constant 1.000000e+00 : f32
    %12 = vector.broadcast %cst_8 : f32 to vector<16x128xf32>
    %13 = arith.addf %12, %11 : vector<16x128xf32>
    %14 = tpu.reciprocal %13 {approx = true} : vector<16x128xf32> -> vector<16x128xf32>
    %cst_9 = arith.constant 1.06140542 : f32
    %15 = vector.broadcast %cst_9 : f32 to vector<16x128xf32>
    %16 = arith.mulf %15, %14 : vector<16x128xf32>
    %cst_10 = arith.constant -1.45315206 : f32
    %17 = vector.broadcast %cst_10 : f32 to vector<16x128xf32>
    %18 = arith.addf %16, %17 : vector<16x128xf32>
    %19 = arith.mulf %18, %14 : vector<16x128xf32>
    %cst_11 = arith.constant 1.42141378 : f32
    %20 = vector.broadcast %cst_11 : f32 to vector<16x128xf32>
    %21 = arith.addf %19, %20 : vector<16x128xf32>
    %22 = arith.mulf %21, %14 : vector<16x128xf32>
    %cst_12 = arith.constant -0.284496725 : f32
    %23 = vector.broadcast %cst_12 : f32 to vector<16x128xf32>
    %24 = arith.addf %22, %23 : vector<16x128xf32>
    %25 = arith.mulf %24, %14 : vector<16x128xf32>
    %cst_13 = arith.constant 0.254829586 : f32
    %26 = vector.broadcast %cst_13 : f32 to vector<16x128xf32>
    %27 = arith.addf %25, %26 : vector<16x128xf32>
    %28 = arith.mulf %27, %14 : vector<16x128xf32>
    %cst_14 = arith.constant 0.000000e+00 : f32
    %29 = vector.broadcast %cst_14 : f32 to vector<16x128xf32>
    %30 = arith.subf %29, %9 : vector<16x128xf32>
    %31 = arith.mulf %30, %9 : vector<16x128xf32>
    %32 = math.exp %31 : vector<16x128xf32>
    %33 = arith.mulf %28, %32 : vector<16x128xf32>
    %cst_15 = arith.constant 1.000000e+00 : f32
    %34 = vector.broadcast %cst_15 : f32 to vector<16x128xf32>
    %35 = arith.subf %34, %33 : vector<16x128xf32>
    %cst_16 = arith.constant 5.000000e-01 : f32
    %36 = vector.broadcast %cst_16 : f32 to vector<16x128xf32>
    %37 = arith.mulf %36, %6 : vector<16x128xf32>
    %cst_17 = arith.constant 5.000000e-01 : f32
    %38 = vector.broadcast %cst_17 : f32 to vector<16x128xf32>
    %39 = arith.mulf %38, %7 : vector<16x128xf32>
    %40 = arith.mulf %39, %35 : vector<16x128xf32>
    %41 = arith.addf %37, %40 : vector<16x128xf32>
    %c0_18 = arith.constant 0 : index
    %c0_19 = arith.constant 0 : index
    %42 = vector.load %arg4[%c0_18, %c0_19] : memref<128x128xf32, #tpu.memory_space<vmem>>, vector<128x128xf32>
    %cst_20 = arith.constant dense<0.000000e+00> : vector<16x128xf32>
    %43 = tpu.matmul %41, %42, %cst_20 {dimension_numbers = #tpu.dot_dimension_numbers<[1], [0], [0], [1], [0, 0, 1, 1], [], []>} : vector<16x128xf32>, vector<128x128xf32>, vector<16x128xf32> -> vector<16x128xf32>
    %44 = arith.addf %1, %43 : vector<16x128xf32>
    %c0_21 = arith.constant 0 : index
    %c0_22 = arith.constant 0 : index
    %45 = vector.load %arg5[%c0_21, %c0_22] : memref<1x128xf32, #tpu.memory_space<vmem>>, vector<1x128xf32>
    %46 = vector.broadcast %45 : vector<1x128xf32> to vector<16x128xf32>
    %47 = arith.addf %44, %46 : vector<16x128xf32>
    %c0_23 = arith.constant 0 : index
    %c0_24 = arith.constant 0 : index
    %48 = vector.load %arg6[%c0_23, %c0_24] : memref<16x128xf32, #tpu.memory_space<vmem>>, vector<16x128xf32>
    tpu.vector_store %arg6[%c0_23, %c0_24], %47 {strides = array<i32>} : memref<16x128xf32, #tpu.memory_space<vmem>>, vector<16x128xf32>,
    return
  }
  func.func @transform_0(%arg0: i32) -> (i32, i32) {
    %c0_i32 = arith.constant 0 : i32
    %c0_i32_0 = arith.constant 0 : i32
    return %arg0, %c0_i32 : i32, i32
  }
  func.func @transform_1(%arg0: i32) -> (i32, i32) {
    %c0_i32 = arith.constant 0 : i32
    %c0_i32_0 = arith.constant 0 : i32
    %c0_i32_1 = arith.constant 0 : i32
    return %c0_i32, %c0_i32_0 : i32, i32
  }
  func.func @transform_2(%arg0: i32) -> (i32, i32) {
    %c0_i32 = arith.constant 0 : i32
    %c0_i32_0 = arith.constant 0 : i32
    %c0_i32_1 = arith.constant 0 : i32
    return %c0_i32, %c0_i32_0 : i32, i32
  }
  func.func @transform_3(%arg0: i32) -> (i32, i32) {
    %c0_i32 = arith.constant 0 : i32
    %c0_i32_0 = arith.constant 0 : i32
    %c0_i32_1 = arith.constant 0 : i32
    return %c0_i32, %c0_i32_0 : i32, i32
  }
  func.func @transform_4(%arg0: i32) -> (i32, i32) {
    %c0_i32 = arith.constant 0 : i32
    %c0_i32_0 = arith.constant 0 : i32
    %c0_i32_1 = arith.constant 0 : i32
    return %c0_i32, %c0_i32_0 : i32, i32
  }
  func.func @transform_5(%arg0: i32) -> (i32, i32) {
    %c0_i32 = arith.constant 0 : i32
    %c0_i32_0 = arith.constant 0 : i32
    return %arg0, %c0_i32 : i32, i32
  }
}

</mosaic_0001>

<llo_original>
// kernel: mlp_forward.1
$region0: #{mlp_forward.1}
  #allocation0 [shape = 'u32[]', space=smem, size = 0x4, offset = 0x4, fixed_abs, tag = 'smem constant byte address 0x4 - core index']
  #allocation1 [shape = 'u32[72,128]{1,0:T(1,128)}', space=vmem, size = 0x9000, scoped, tag = 'internal scratch']
  %s0 = inlined_call_operand.vmem [shape: f32[16,128], index: 0, kind: input, shape index: {}]
  %s1 = inlined_call_operand.vmem [shape: f32[128,128], index: 1, kind: input, shape index: {}]
  %s2 = inlined_call_operand.vmem [shape: f32[1,128], index: 2, kind: input, shape index: {}]
  %s3 = inlined_call_operand.vmem [shape: f32[128,128], index: 3, kind: input, shape index: {}]
  %s4 = inlined_call_operand.vmem [shape: f32[1,128], index: 4, kind: input, shape index: {}]
  %s5 = inlined_call_operand.vmem [shape: f32[16,128], index: 5, kind: output, shape index: {}]
  %s6 = sld [smem:[#allocation0]]
  $region30: #{mlp_forward.1} parent=0
    _
  %s8 = ssub.s32 1, %s6
  %s9 = scalar_select 0, %s8, %s6
  // Predicated region
  $region2: #{mlp_forward.1} parent=0 // pred_check
    _
  $region3: #{mlp_forward.1} parent=0 // pred_check_branch
    %11 = sbr.rel (0) target = $region5
  $region4: #{mlp_forward.1} parent=0 // pred_region
    _
  $region5: #{mlp_forward.1} parent=0 // pred_fallthru
    _
  // Predicated region
  $region6: #{mlp_forward.1} parent=0 // pred_check
    _
  $region7: #{mlp_forward.1} parent=0 // pred_check_branch
    %13 = sbr.rel (0) target = $region9
  $region8: #{mlp_forward.1} parent=0 // pred_region
    _
  $region9: #{mlp_forward.1} parent=0 // pred_fallthru
    _
  // Predicated region
  $region10: #{mlp_forward.1} parent=0 // pred_check
    _
  $region11: #{mlp_forward.1} parent=0 // pred_check_branch
    %15 = sbr.rel (0) target = $region13
  $region12: #{mlp_forward.1} parent=0 // pred_region
    _
  $region13: #{mlp_forward.1} parent=0 // pred_fallthru
    _
  // Predicated region
  $region14: #{mlp_forward.1} parent=0 // pred_check
    _
  $region15: #{mlp_forward.1} parent=0 // pred_check_branch
    %17 = sbr.rel (0) target = $region17
  $region16: #{mlp_forward.1} parent=0 // pred_region
    _
  $region17: #{mlp_forward.1} parent=0 // pred_fallthru
    _
  // Predicated region
  $region18: #{mlp_forward.1} parent=0 // pred_check
    _
  $region19: #{mlp_forward.1} parent=0 // pred_check_branch
    %19 = sbr.rel (0) target = $region21
  $region20: #{mlp_forward.1} parent=0 // pred_region
    _
  $region21: #{mlp_forward.1} parent=0 // pred_fallthru
    _
  %v20 = vld [vmem:[%s0] sm:$0xff]
  %v21 = vld [vmem:[%s0 + $0x8] sm:$0xff]
  %v22 = vld [vmem:[%s1] sm:$0xff]
  %v23 = vld [vmem:[%s1 + $0x8] sm:$0xff]
  %v24 = vld [vmem:[%s1 + $0x10] sm:$0xff]
  %v25 = vld [vmem:[%s1 + $0x18] sm:$0xff]
  %v26 = vld [vmem:[%s1 + $0x20] sm:$0xff]
  %v27 = vld [vmem:[%s1 + $0x28] sm:$0xff]
  %v28 = vld [vmem:[%s1 + $0x30] sm:$0xff]
  %v29 = vld [vmem:[%s1 + $0x38] sm:$0xff]
  %v30 = vld [vmem:[%s1 + $0x40] sm:$0xff]
  %v31 = vld [vmem:[%s1 + $0x48] sm:$0xff]
  %v32 = vld [vmem:[%s1 + $0x50] sm:$0xff]
  %v33 = vld [vmem:[%s1 + $0x58] sm:$0xff]
  %v34 = vld [vmem:[%s1 + $0x60] sm:$0xff]
  %v35 = vld [vmem:[%s1 + $0x68] sm:$0xff]
  %v36 = vld [vmem:[%s1 + $0x70] sm:$0xff]
  %v37 = vld [vmem:[%s1 + $0x78] sm:$0xff]
  %v38 = vld [vmem:[%s2] sm:$0x1]
  %v40 = vperm.slane %v38, 0
  %42 = vmatpush.msra.mxu0 %v37
  %43 = vmatpush.msra.mxu0 %v36
  %44 = vmatpush.msra.mxu0 %v35
  %45 = vmatpush.msra.mxu0 %v34
  %46 = vmatpush.msra.mxu0 %v33
  %47 = vmatpush.msra.mxu0 %v32
  %48 = vmatpush.msra.mxu0 %v31
  %49 = vmatpush.msra.mxu0 %v30
  %50 = vmatpush.msra.mxu0 %v29
  %51 = vmatpush.msra.mxu0 %v28
  %52 = vmatpush.msra.mxu0 %v27
  %53 = vmatpush.msra.mxu0 %v26
  %54 = vmatpush.msra.mxu0 %v25
  %55 = vmatpush.msra.mxu0 %v24
  %56 = vmatpush.msra.mxu0 %v23
  %57 = vmatpush.msra.mxu0 %v22
  %58 = vmatmul.f32.gmra.mxu0 %v20
  %v59 = vpop.f32.mrf.mxu0
  %v60 = vadd.f32 %v40, %v59
  %61 = vmatmul.f32.gmra.mxu0 %v21
  %v62 = vpop.f32.mrf.mxu0
  %v63 = vadd.f32 %v40, %v62
  %64 = vdwg.mxu0
  %v65 = vand.u32 2147483647, %v60
  %v66 = vand.u32 2147483647, %v63
  %v67 = vmul.f32 %v65, 0.70710677
  %v68 = vmul.f32 %v66, 0.70710677
  %v69 = vmul.f32 %v67, 0.3275911
  %v70 = vmul.f32 %v68, 0.3275911
  %v71 = vadd.f32 %v69, 1.0
  %v72 = vadd.f32 %v70, 1.0
  %v73 = vrcp.pop %v71
  %v74 = vrcp.pop %v72
  %v75 = vmul.f32 %v73, 1.0614054
  %v76 = vmul.f32 %v74, 1.0614054
  %v77 = vadd.f32 %v75, -1.4531521
  %v78 = vadd.f32 %v76, -1.4531521
  %v79 = vmul.f32 %v77, %v73
  %v80 = vmul.f32 %v78, %v74
  %v81 = vadd.f32 %v79, 1.4214138
  %v82 = vadd.f32 %v80, 1.4214138
  %v83 = vmul.f32 %v81, %v73
  %v84 = vmul.f32 %v82, %v74
  %v85 = vadd.f32 %v83, -0.28449672
  %v86 = vadd.f32 %v84, -0.28449672
  %v87 = vmul.f32 %v85, %v73
  %v88 = vmul.f32 %v86, %v74
  %v89 = vadd.f32 %v87, 0.2548296
  %v90 = vadd.f32 %v88, 0.2548296
  %v91 = vmul.f32 %v89, %v73
  %v92 = vmul.f32 %v90, %v74
  %v93 = vsub.f32 0.0, %v67
  %v94 = vsub.f32 0.0, %v68
  %v95 = vmul.f32 %v93, %v67
  %v96 = vmul.f32 %v94, %v68
  %v97 = vmul.f32 %v95, 1.442695
  %v98 = vpow.pop %v97
  %v99 = vmul.f32 %v96, 1.442695
  %v100 = vpow.pop %v99
  %v101 = vmul.f32 %v91, %v98
  %v102 = vmul.f32 %v92, %v100
  %v103 = vsub.f32 1.0, %v101
  %v104 = vsub.f32 1.0, %v102
  %v105 = vmul.f32 %v60, 0.5
  %v106 = vmul.f32 %v63, 0.5
  %v107 = vmul.f32 %v65, 0.5
  %v108 = vmul.f32 %v66, 0.5
  %v109 = vmul.f32 %v107, %v103
  %v110 = vmul.f32 %v108, %v104
  %v111 = vadd.f32 %v105, %v109
  %v112 = vadd.f32 %v106, %v110
  %v113 = vld [vmem:[%s3] sm:$0xff]
  %v114 = vld [vmem:[%s3 + $0x8] sm:$0xff]
  %v115 = vld [vmem:[%s3 + $0x10] sm:$0xff]
  %v116 = vld [vmem:[%s3 + $0x18] sm:$0xff]
  %v117 = vld [vmem:[%s3 + $0x20] sm:$0xff]
  %v118 = vld [vmem:[%s3 + $0x28] sm:$0xff]
  %v119 = vld [vmem:[%s3 + $0x30] sm:$0xff]
  %v120 = vld [vmem:[%s3 + $0x38] sm:$0xff]
  %v121 = vld [vmem:[%s3 + $0x40] sm:$0xff]
  %v122 = vld [vmem:[%s3 + $0x48] sm:$0xff]
  %v123 = vld [vmem:[%s3 + $0x50] sm:$0xff]
  %v124 = vld [vmem:[%s3 + $0x58] sm:$0xff]
  %v125 = vld [vmem:[%s3 + $0x60] sm:$0xff]
  %v126 = vld [vmem:[%s3 + $0x68] sm:$0xff]
  %v127 = vld [vmem:[%s3 + $0x70] sm:$0xff]
  %v128 = vld [vmem:[%s3 + $0x78] sm:$0xff]
  %v129 = vld [vmem:[%s4] sm:$0x1]
  %v131 = vperm.slane %v129, 0
  %133 = vmatpush.msra.mxu0 %v128
  %134 = vmatpush.msra.mxu0 %v127
  %135 = vmatpush.msra.mxu0 %v126
  %136 = vmatpush.msra.mxu0 %v125
  %137 = vmatpush.msra.mxu0 %v124
  %138 = vmatpush.msra.mxu0 %v123
  %139 = vmatpush.msra.mxu0 %v122
  %140 = vmatpush.msra.mxu0 %v121
  %141 = vmatpush.msra.mxu0 %v120
  %142 = vmatpush.msra.mxu0 %v119
  %143 = vmatpush.msra.mxu0 %v118
  %144 = vmatpush.msra.mxu0 %v117
  %145 = vmatpush.msra.mxu0 %v116
  %146 = vmatpush.msra.mxu0 %v115
  %147 = vmatpush.msra.mxu0 %v114
  %148 = vmatpush.msra.mxu0 %v113
  %149 = vmatmul.f32.gmra.mxu0 %v111
  %v150 = vpop.f32.mrf.mxu0
  %v151 = vadd.f32 %v131, %v150
  %152 = vmatmul.f32.gmra.mxu0 %v112
  %v153 = vpop.f32.mrf.mxu0
  %v154 = vadd.f32 %v131, %v153
  %155 = vdwg.mxu0
  %156 = vst [vmem:[%s5] sm:$0xff] %v151
  %157 = vst [vmem:[%s5 + $0x8] sm:$0xff] %v154
  // Predicated region
  $region22: #{mlp_forward.1} parent=0 // pred_check
    _
  $region23: #{mlp_forward.1} parent=0 // pred_check_branch
    %159 = sbr.rel (0) target = $region25
  $region24: #{mlp_forward.1} parent=0 // pred_region
    _
  $region25: #{mlp_forward.1} parent=0 // pred_fallthru
    _
  // Predicated region
  $region26: #{mlp_forward.1} parent=0 // pred_check
    _
  $region27: #{mlp_forward.1} parent=0 // pred_check_branch
    %161 = sbr.rel (0) target = $region29
  $region28: #{mlp_forward.1} parent=0 // pred_region
    _
  $region29: #{mlp_forward.1} parent=0 // pred_fallthru
    _

</llo_original>
